<compile_context>
chip_gen: v7x
topology: tpu7x:2x2x1
jax: 0.10.0
libtpu: 0.0.40
codegen_flags: <defaults>
</compile_context>

<pallas_src>
import functools
import math

import jax
import jax.numpy as jnp
from jax.experimental import pallas as pl
from jax.experimental.pallas import tpu as pltpu


def _round_up(x, m):
    return ((x + m - 1) // m) * m


def _cdiv(a, b):
    return -(-a // b)


def _balanced_tile(dim, tile_max, align):
    """Largest aligned tile <= ~tile_max whose block count bounds padding
    waste to < align per block (instead of up to tile_max - 1 elements)."""
    dim = max(int(dim), 1)
    n_blocks = _cdiv(dim, tile_max)
    tile = _round_up(_cdiv(dim, n_blocks), align)
    return min(tile, _round_up(dim, align))


def _vmem_limit_bytes(needed_bytes):
    """Per-generation scoped-VMEM limit with headroom for Mosaic internals."""
    try:
        phys = int(pltpu.get_tpu_info().vmem_capacity_bytes)
    except Exception:  # interpret mode / unknown chip
        phys = 64 * 1024 * 1024
    # ~52 MiB cap on v7x (64 MiB physical), ~116 MiB on v5e/v6e (128 MiB).
    cap = max(48 * 1024 * 1024, phys - 12 * 1024 * 1024)
    want = int(needed_bytes) * 5 // 4 + (4 << 20)   # 25% + 4 MiB margin
    return int(min(cap, max(32 * 1024 * 1024, want)))


def _mlp_kernel_acc(x_ref, w_ref, b_ref, o_ref, acc_ref):
    # x_ref: (tm, tk) f32 (cast to bf16 in-kernel, hidden under MXU work)
    # w_ref: (tk, tn) bf16, pre-transposed canonical RHS (no per-tile vxpose)
    # b_ref: (1, tn) f32   o_ref: (tm, tn)   acc_ref: (tm, tn) f32
    k = pl.program_id(2)

    @pl.when(k == 0)
    def _():
        acc_ref[...] = jnp.zeros_like(acc_ref)

    acc_ref[...] += jnp.dot(
        x_ref[...].astype(jnp.bfloat16), w_ref[...],
        preferred_element_type=jnp.float32)

    @pl.when(k == pl.num_programs(2) - 1)
    def _():
        # Bias + tanh epilogue in f32 (v5e has no bf16 VPU/EUP).
        o_ref[...] = jnp.tanh(acc_ref[...] + b_ref[...]).astype(o_ref.dtype)
        # TODO(synk): training-mode SharedDropout would seed pltpu.prng_seed
        # once per invocation and mask the f32 (tm, tn) tile with
        # pltpu.prng_random_bits before the cast; p=0 / eval mode is identity.


def _mlp_kernel_noacc(x_ref, w_ref, b_ref, o_ref):
    # Single K-step variant: no zero-fill, no scratch-accumulator round-trip.
    acc = jnp.dot(x_ref[...].astype(jnp.bfloat16), w_ref[...],
                  preferred_element_type=jnp.float32)
    o_ref[...] = jnp.tanh(acc + b_ref[...]).astype(o_ref.dtype)


def prepare_mlp_params(weight, bias, *, tn_max=512, tk_max=1024):
    """One-time parameter prep, hoisted off the per-forward path.

    weight: (dim_output, dim_input) PyTorch layout; bias: (dim_output,).
    Returns (w_kn, b2d, meta): w_kn is bf16 (K_pad, N_pad) -- the canonical
    MXU RHS -- and b2d is f32 (1, N_pad). meta carries the static tile sizes.
    """
    dim_output, dim_input = weight.shape
    tn = _balanced_tile(dim_output, tn_max, 128)
    tk = _balanced_tile(dim_input, tk_max, 128)
    n_pad = _round_up(dim_output, tn)
    k_pad = _round_up(dim_input, tk)
    w_kn = jnp.pad(weight.T.astype(jnp.bfloat16),
                   ((0, k_pad - dim_input), (0, n_pad - dim_output)))
    b2d = jnp.pad(bias.astype(jnp.float32),
                  (0, n_pad - dim_output)).reshape(1, n_pad)
    meta = dict(dim_input=dim_input, dim_output=dim_output, tn=tn, tk=tk)
    return w_kn, b2d, meta


@functools.partial(jax.jit, static_argnames=("dim_output", "tn", "tk", "tm_max"))
def mlp_forward(x, w_kn, b2d, *, dim_output, tn, tk, tm_max=1024):
    """tanh(x @ W.T + b) with W pre-transposed/padded by prepare_mlp_params."""
    dim_input = x.shape[-1]
    k_pad, n_pad = w_kn.shape
    lead = x.shape[:-1]
    n_rows = int(math.prod(lead)) if lead else 1

    tm = _balanced_tile(n_rows, tm_max, 8)
    M = _round_up(n_rows, tm)

    # v7x has 2 TensorCores: if the parallel grid collapsed to a single block
    # on a non-trivial problem, halve tm so both cores get work.
    if (M // tm) * (n_pad // tn) < 2 and n_rows >= 512:
        tm = _round_up(_cdiv(n_rows, 2), 8)
        M = _round_up(n_rows, tm)

    nk = k_pad // tk
    grid = (M // tm, n_pad // tn, nk)

    # x stays f32 (in-kernel bf16 cast); pad only when ragged (no-op otherwise).
    x2d = x.reshape(n_rows, dim_input)
    x2d = jnp.pad(x2d, ((0, M - n_rows), (0, k_pad - dim_input)))

    out_dtype = x.dtype
    out_isz = jnp.dtype(out_dtype).itemsize
    x_isz = jnp.dtype(x2d.dtype).itemsize

    # Double-buffered I/O tiles + (optional) f32 accumulator.
    needed = (2 * (tm * tk * x_isz + tk * tn * 2 + tn * 4 + tm * tn * out_isz)
              + (tm * tn * 4 if nk > 1 else 0))

    cost = pl.CostEstimate(
        flops=2 * M * n_pad * k_pad,
        transcendentals=M * n_pad,
        bytes_accessed=(M * k_pad * x_isz + k_pad * n_pad * 2
                        + n_pad * 4 + M * n_pad * out_isz),
    )

    in_specs = [
        pl.BlockSpec((tm, tk), lambda i, j, k: (i, k)),   # x tile (f32)
        pl.BlockSpec((tk, tn), lambda i, j, k: (k, j)),   # weight tile (bf16, (K,N))
        pl.BlockSpec((1, tn), lambda i, j, k: (0, j)),    # bias tile (f32)
    ]
    out_spec = pl.BlockSpec((tm, tn), lambda i, j, k: (i, j))

    kernel = _mlp_kernel_acc if nk > 1 else _mlp_kernel_noacc
    scratch = [pltpu.VMEM((tm, tn), jnp.float32)] if nk > 1 else []

    out = pl.pallas_call(
        kernel,
        out_shape=jax.ShapeDtypeStruct((M, n_pad), out_dtype),
        grid_spec=pltpu.PrefetchScalarGridSpec(
            num_scalar_prefetch=0,
            grid=grid,
            in_specs=in_specs,
            out_specs=out_spec,
            scratch_shapes=scratch,
        ),
        compiler_params=pltpu.CompilerParams(
            dimension_semantics=("parallel", "parallel", "arbitrary"),
            vmem_limit_bytes=_vmem_limit_bytes(needed),
        ),
        cost_estimate=cost,
    )(x2d, w_kn, b2d)

    return out[:n_rows, :dim_output].reshape(*lead, dim_output)


def orthogonal_init(key, rows, cols, dtype=jnp.float32):
    """Deterministic orthogonal init (mirrors nn.init.orthogonal_)."""
    a = jax.random.normal(key, (max(rows, cols), min(rows, cols)), dtype=jnp.float32)
    q, r = jnp.linalg.qr(a)
    q = q * jnp.sign(jnp.diag(r))[None, :]
    if rows < cols:
        q = q.T
    return q[:rows, :cols].astype(dtype)


if __name__ == "__main__":
    key = jax.random.PRNGKey(0)
    k_x, k_w = jax.random.split(key)

    batch, seq, dim_input, dim_output = 2, 8, 32, 32

    x = jax.random.normal(k_x, (batch, seq, dim_input), dtype=jnp.float32)
    weight = orthogonal_init(k_w, dim_output, dim_input)   # (dim_output, dim_input)
    bias = jnp.zeros((dim_output,), dtype=jnp.float32)

    # One-time weight prep (transpose / pad / bf16) -- hoisted off the
    # per-forward jitted path.
    w_kn, b2d, meta = prepare_mlp_params(weight, bias)
    w_kn, b2d = jax.block_until_ready((w_kn, b2d))

    out = mlp_forward(x, w_kn, b2d, dim_output=meta["dim_output"],
                      tn=meta["tn"], tk=meta["tk"])
    out = jax.block_until_ready(out)

    # Reference check in plain JAX (bf16 MXU operands -> loosened tolerance).
    ref = jnp.tanh(x @ weight.T + bias)
    assert out.shape == (batch, seq, dim_output)
    assert jnp.allclose(out, ref, atol=2e-2, rtol=2e-2), \
        float(jnp.max(jnp.abs(out - ref)))

    print("KERNEL_OK")
</pallas_src>

<mosaic_0001>
module attributes {stable_mosaic.version = 11 : i64} {
  func.func @_mlp_kernel_noacc(%arg0: i32, %arg1: i32, %arg2: i32, %arg3: memref<16x128xf32, #tpu.memory_space<vmem>>, %arg4: memref<128x128xbf16, #tpu.memory_space<vmem>>, %arg5: memref<1x128xf32, #tpu.memory_space<vmem>>, %arg6: memref<16x128xf32, #tpu.memory_space<vmem>>) attributes {dimension_semantics = [#tpu.dimension_semantics<parallel>, #tpu.dimension_semantics<parallel>, #tpu.dimension_semantics<arbitrary>], iteration_bounds = array<i64: 1, 1, 1>, scalar_prefetch = 0 : i64, scratch_operands = 0 : i64, tpu.core_type = #tpu.core_type<tc>, window_params = [{transform_indices = @transform_0, window_bounds = array<i64: 16, 128>}, {transform_indices = @transform_1, window_bounds = array<i64: 128, 128>}, {transform_indices = @transform_2, window_bounds = array<i64: 1, 128>}, {transform_indices = @transform_3, window_bounds = array<i64: 16, 128>}]} {
    %c0 = arith.constant 0 : index
    %c0_0 = arith.constant 0 : index
    %0 = vector.load %arg3[%c0, %c0_0] : memref<16x128xf32, #tpu.memory_space<vmem>>, vector<16x128xf32>
    %1 = arith.truncf %0 : vector<16x128xf32> to vector<16x128xbf16>
    %c0_1 = arith.constant 0 : index
    %c0_2 = arith.constant 0 : index
    %2 = vector.load %arg4[%c0_1, %c0_2] : memref<128x128xbf16, #tpu.memory_space<vmem>>, vector<128x128xbf16>
    %cst = arith.constant dense<0.000000e+00> : vector<16x128xf32>
    %3 = tpu.matmul %1, %2, %cst {dimension_numbers = #tpu.dot_dimension_numbers<[1], [0], [0], [1], [0, 0, 1, 1], [], []>} : vector<16x128xbf16>, vector<128x128xbf16>, vector<16x128xf32> -> vector<16x128xf32>
    %c0_3 = arith.constant 0 : index
    %c0_4 = arith.constant 0 : index
    %4 = vector.load %arg5[%c0_3, %c0_4] : memref<1x128xf32, #tpu.memory_space<vmem>>, vector<1x128xf32>
    %5 = vector.broadcast %4 : vector<1x128xf32> to vector<16x128xf32>
    %6 = arith.addf %3, %5 : vector<16x128xf32>
    %7 = math.tanh %6 : vector<16x128xf32>
    %c0_5 = arith.constant 0 : index
    %c0_6 = arith.constant 0 : index
    %8 = vector.load %arg6[%c0_5, %c0_6] : memref<16x128xf32, #tpu.memory_space<vmem>>, vector<16x128xf32>
    tpu.vector_store %arg6[%c0_5, %c0_6], %7 {strides = array<i32>} : memref<16x128xf32, #tpu.memory_space<vmem>>, vector<16x128xf32>,
    return
  }
  func.func @transform_0(%arg0: i32, %arg1: i32, %arg2: i32) -> (i32, i32) {
    %c0_i32 = arith.constant 0 : i32
    return %arg0, %arg2 : i32, i32
  }
  func.func @transform_1(%arg0: i32, %arg1: i32, %arg2: i32) -> (i32, i32) {
    %c0_i32 = arith.constant 0 : i32
    return %arg2, %arg1 : i32, i32
  }
  func.func @transform_2(%arg0: i32, %arg1: i32, %arg2: i32) -> (i32, i32) {
    %c0_i32 = arith.constant 0 : i32
    %c0_i32_0 = arith.constant 0 : i32
    return %c0_i32, %arg1 : i32, i32
  }
  func.func @transform_3(%arg0: i32, %arg1: i32, %arg2: i32) -> (i32, i32) {
    %c0_i32 = arith.constant 0 : i32
    return %arg0, %arg1 : i32, i32
  }
}

</mosaic_0001>

<llo_original>
// kernel: mlp_forward.1
$region0: #{mlp_forward.1}
  #allocation0 [shape = 'u32[]', space=smem, size = 0x4, offset = 0x4, fixed_abs, tag = 'smem constant byte address 0x4 - core index']
  #allocation1 [shape = 'u32[144,128]{1,0:T(1,128)}', space=vmem, size = 0x12000, scoped, tag = 'internal scratch']
  %s0 = inlined_call_operand.vmem [shape: f32[16,128], index: 0, kind: input, shape index: {}]
  %s1 = inlined_call_operand.hbm [shape: bf16[128,128], index: 1, kind: input, shape index: {}]
  %s2 = inlined_call_operand.vmem [shape: f32[1,128], index: 2, kind: input, shape index: {}]
  %s3 = inlined_call_operand.vmem [shape: f32[16,128], index: 3, kind: output, shape index: {}]
  %s4 = sld [smem:[#allocation0]]
  $region26: #{mlp_forward.1} parent=0
    _
  %s6 = ssub.s32 1, %s4
  %s7 = scalar_select 0, %s6, %s4
  $region1: #{mlp_forward.1} parent=0
    #allocation2 [shape = 'u8[32768]{0}', space=vmem, size = 0x8000, scoped, tag = 'input window, operand 1, single buffered']
    #allocation3 [shape = 's32[1]{0}', space=sflag, size = 0x4, scoped, tag = 'scoped memory for mlp_forward.1']
    %8 = vsyncpa [#allocation3], 0
    // Predicated region
    $region2: #{mlp_forward.1} parent=1 // pred_check
      _
    $region3: #{mlp_forward.1} parent=1 // pred_check_branch
      %10 = sbr.rel (0) target = $region5
    $region4: #{mlp_forward.1} parent=1 // pred_region
      _
    $region5: #{mlp_forward.1} parent=1 // pred_fallthru
      _
    // Predicated region
    $region6: #{mlp_forward.1} parent=1 // pred_check
      _
    $region7: #{mlp_forward.1} parent=1 // pred_check_branch
      %12 = sbr.rel (0) target = $region9
    $region8: #{mlp_forward.1} parent=1 // pred_region
      %s14 = ssub.s32 1024, 1024
      %15 = vsyncadd [#allocation3], %s14
      %s16 = sshll.u32 [#allocation2], 4
      %s17 = int_to_ptr.vmem [resolvable:$true] %s16
      %22 = dma.hbm_to_vmem [thread:$0]  %s1, 1024, %s17, [#allocation3], 64, 64, 4
    $region9: #{mlp_forward.1} parent=1 // pred_fallthru
      _
    // Predicated region
    $region10: #{mlp_forward.1} parent=1 // pred_check
      _
    $region11: #{mlp_forward.1} parent=1 // pred_check_branch
      %24 = sbr.rel (0) target = $region13
    $region12: #{mlp_forward.1} parent=1 // pred_region
      _
    $region13: #{mlp_forward.1} parent=1 // pred_fallthru
      _
    // Predicated region
    $region14: #{mlp_forward.1} parent=1 // pred_check
      _
    $region15: #{mlp_forward.1} parent=1 // pred_check_branch
      %26 = sbr.rel (0) target = $region17
    $region16: #{mlp_forward.1} parent=1 // pred_region
      %27 = dma.done [#allocation3], 1024
    $region17: #{mlp_forward.1} parent=1 // pred_fallthru
      _
    %v29 = vld [vmem:[%s0] sm:$0xff]
    %v30 = vld [vmem:[%s0 + $0x8] sm:$0xff]
    %v31 = vpack.c.bf16 %v30, %v29
    %v32 = vld [vmem:[#allocation2] sm:$0xf]
    %v33 = vld [vmem:[#allocation2 + $0x4] sm:$0xf]
    %v34 = vld [vmem:[#allocation2 + $0x8] sm:$0xf]
    %v35 = vld [vmem:[#allocation2 + $0xc] sm:$0xf]
    %v36 = vld [vmem:[#allocation2 + $0x10] sm:$0xf]
    %v37 = vld [vmem:[#allocation2 + $0x14] sm:$0xf]
    %v38 = vld [vmem:[#allocation2 + $0x18] sm:$0xf]
    %v39 = vld [vmem:[#allocation2 + $0x1c] sm:$0xf]
    %v40 = vld [vmem:[#allocation2 + $0x20] sm:$0xf]
    %v41 = vld [vmem:[#allocation2 + $0x24] sm:$0xf]
    %v42 = vld [vmem:[#allocation2 + $0x28] sm:$0xf]
    %v43 = vld [vmem:[#allocation2 + $0x2c] sm:$0xf]
    %v44 = vld [vmem:[#allocation2 + $0x30] sm:$0xf]
    %v45 = vld [vmem:[#allocation2 + $0x34] sm:$0xf]
    %v46 = vld [vmem:[#allocation2 + $0x38] sm:$0xf]
    %v47 = vld [vmem:[#allocation2 + $0x3c] sm:$0xf]
    %v48 = vld [vmem:[%s2] sm:$0x1]
    %v50 = vlaneseq
    %v51 = vshrl.u32 %v50, 7
    %v52 = vsub.s32 0, %v51
    %v53 = vrot.slane %v48, %v52
    %v71 = vunpack.c.l.b16 %v32
    %v72 = vunpack.c.l.b16 %v33
    %v73 = vunpack.c.l.b16 %v34
    %v74 = vunpack.c.l.b16 %v35
    %v75 = vunpack.c.l.b16 %v36
    %v76 = vunpack.c.l.b16 %v37
    %v77 = vunpack.c.l.b16 %v38
    %v78 = vunpack.c.l.b16 %v39
    %v79 = vunpack.c.l.b16 %v40
    %v80 = vunpack.c.l.b16 %v41
    %v81 = vunpack.c.l.b16 %v42
    %v82 = vunpack.c.l.b16 %v43
    %v83 = vunpack.c.l.b16 %v44
    %v84 = vunpack.c.l.b16 %v45
    %v85 = vunpack.c.l.b16 %v46
    %v86 = vunpack.c.l.b16 %v47
    %v87 = vpack.c.b16 %v72, %v71
    %v88 = vpack.c.b16 %v74, %v73
    %v89 = vpack.c.b16 %v76, %v75
    %v90 = vpack.c.b16 %v78, %v77
    %v91 = vpack.c.b16 %v80, %v79
    %v92 = vpack.c.b16 %v82, %v81
    %v93 = vpack.c.b16 %v84, %v83
    %v94 = vpack.c.b16 %v86, %v85
    %103 = vmatprep.subr.bf16.mxu0 0
    %104 = vmatpush1.bf16.msra.mxu0 %v87
    %105 = vmatprep.subr.bf16.mxu0 0
    %106 = vmatpush1.bf16.msra.mxu0 %v88
    %107 = vmatprep.subr.bf16.mxu0 0
    %108 = vmatpush1.bf16.msra.mxu0 %v89
    %109 = vmatprep.subr.bf16.mxu0 0
    %110 = vmatpush1.bf16.msra.mxu0 %v90
    %111 = vmatprep.subr.bf16.mxu0 0
    %112 = vmatpush1.bf16.msra.mxu0 %v91
    %113 = vmatprep.subr.bf16.mxu0 0
    %114 = vmatpush1.bf16.msra.mxu0 %v92
    %115 = vmatprep.subr.bf16.mxu0 0
    %116 = vmatpush1.bf16.msra.mxu0 %v93
    %117 = vmatprep.subr.bf16.mxu0 0
    %118 = vmatpush1.bf16.msra.mxu0 %v94
    %119 = vmatprep.subr.bf16.mxu0 0
    %120 = vmatpush1.bf16.msra.mxu0 0
    %121 = vmatprep.subr.bf16.mxu0 0
    %122 = vmatpush1.bf16.msra.mxu0 0
    %123 = vmatprep.subr.bf16.mxu0 0
    %124 = vmatpush1.bf16.msra.mxu0 0
    %125 = vmatprep.subr.bf16.mxu0 0
    %126 = vmatpush1.bf16.msra.mxu0 0
    %127 = vmatprep.subr.bf16.mxu0 0
    %128 = vmatpush1.bf16.msra.mxu0 0
    %129 = vmatprep.subr.bf16.mxu0 0
    %130 = vmatpush1.bf16.msra.mxu0 0
    %131 = vmatprep.subr.bf16.mxu0 0
    %132 = vmatpush1.bf16.msra.mxu0 0
    %133 = vmatprep.subr.bf16.mxu0 0
    %134 = vmatpush1.bf16.msra.mxu0 0
    %135 = vmatprep.mubr.bf16.mxu0 0
    %136 = vmatmul.mubr.bf16.gmra.mrb[0].mxu0 %v31
    %v137 = vpop.f32.mrb[0].mxu0
    %v138 = vadd.f32 %v53, %v137
    %v139 = vpop.f32.mrb[0].mxu0
    %v140 = vpop.f32.mrb[0].mxu0
    %v141 = vadd.f32 %v53, %v140
    %v142 = vpop.f32.mrb[0].mxu0
    %143 = vdwg.mxu0
    %v144 = vtanh.pop %v138
    %v145 = vtanh.pop %v141
    %146 = vst [vmem:[%s3] sm:$0xff] %v144
    %147 = vst [vmem:[%s3 + $0x8] sm:$0xff] %v145
    // Predicated region
    $region18: #{mlp_forward.1} parent=1 // pred_check
      _
    $region19: #{mlp_forward.1} parent=1 // pred_check_branch
      %149 = sbr.rel (0) target = $region21
    $region20: #{mlp_forward.1} parent=1 // pred_region
      _
    $region21: #{mlp_forward.1} parent=1 // pred_fallthru
      _
    // Predicated region
    $region22: #{mlp_forward.1} parent=1 // pred_check
      _
    $region23: #{mlp_forward.1} parent=1 // pred_check_branch
      %151 = sbr.rel (0) target = $region25
    $region24: #{mlp_forward.1} parent=1 // pred_region
      _
    $region25: #{mlp_forward.1} parent=1 // pred_fallthru
      _
    %152 = vsyncpa [#allocation3], 1

</llo_original>
